<compile_context>
chip_gen: v7x
topology: tpu7x:2x2x1
jax: 0.10.0
libtpu: 0.0.40
codegen_flags: <defaults>
</compile_context>

<pallas_src>
import functools

import jax
import jax.numpy as jnp
from jax.experimental import pallas as pl
from jax.experimental.pallas import tpu as pltpu


def _round_up(n, m):
    return -(-n // m) * m


def _hw_info():
    """Best-effort TPU-generation detection; conservative defaults on failure."""
    kind = ""
    try:
        kind = jax.devices()[0].device_kind.lower()
    except Exception:
        pass
    vmem_cap = 0
    try:
        vmem_cap = int(getattr(pltpu.get_tpu_info(), "vmem_capacity_bytes", 0))
    except Exception:
        vmem_cap = 0
    if vmem_cap <= 0:
        vmem_cap = 64 * 1024 * 1024          # assume smallest (v7x-class) VMEM
    is_v5 = "v5" in kind
    is_v7 = "7" in kind
    return vmem_cap, is_v5, is_v7


def _residual_kernel(x_ref, w_ref, b_ref, o_ref, *, precision):
    # Full-width weight: the residual is the whole x tile.
    y = jnp.dot(x_ref[...], w_ref[...],
                preferred_element_type=jnp.float32, precision=precision)
    o_ref[...] = (x_ref[...].astype(jnp.float32) + y
                  + b_ref[...].astype(jnp.float32)).astype(o_ref.dtype)


def _residual_kernel_ntiled(x_ref, xres_ref, w_ref, b_ref, o_ref, *, precision):
    # N-tiled weight: the (tile_rows, tile_n) residual slab arrives via its own
    # BlockSpec (lane-aligned DMA, no dynamic in-kernel lane slicing).
    y = jnp.dot(x_ref[...], w_ref[...],
                preferred_element_type=jnp.float32, precision=precision)
    o_ref[...] = (xres_ref[...].astype(jnp.float32) + y
                  + b_ref[...].astype(jnp.float32)).astype(o_ref.dtype)


def _working_set_bytes(tm, tn, H, itemsize, n_tiled):
    """Approximate VMEM working set of one pipelined grid step."""
    w_bufs = 2 if n_tiled else 1         # Buffered(1) when weight block is constant
    ws = (2 * tm * H * itemsize          # x rows tile (double-buffered)
          + w_bufs * H * tn * itemsize   # weight slab
          + w_bufs * tn * itemsize       # bias slab
          + 2 * tm * tn * itemsize       # output tile (double-buffered)
          + 2 * tm * tn * 4)             # f32 dot result + add intermediate
    if n_tiled:
        ws += 2 * tm * tn * itemsize     # residual x slab (double-buffered)
    return ws


def residual_linear(x, w, b, *, tile_rows=None, tile_n=None,
                    vmem_limit_bytes=None, single_buffer_weight=True,
                    precision=None):
    """Fused Residual(Linear): returns x + (x @ w + b).  x: (B, S, H)."""
    B, S, H = x.shape
    assert w.shape == (H, H) and b.shape == (H,)
    assert H % 128 == 0, "hidden dim must be a multiple of the 128-lane width"
    rows = B * S
    itemsize = jnp.dtype(x.dtype).itemsize
    sublane = max(8, 32 // itemsize)                 # 8 for f32, 16 for bf16

    vmem_cap, is_v5, is_v7 = _hw_info()
    if vmem_limit_bytes is None:
        # ~96 MiB on 128-MiB chips (v5e/v6e), ~48 MiB on v7x (64 MiB physical).
        vmem_limit_bytes = vmem_cap * 3 // 4
    budget = vmem_limit_bytes * 4 // 5               # headroom for Mosaic scratch
    min_tn_hw = 128 if is_v5 else 256                # MXU width: 128x128 vs 2x256x256

    # --- row tile ----------------------------------------------------------
    if tile_rows is None:
        desired = 1024 if is_v7 else 512             # amortize weight-slab DMA on v7x
        tile_rows = _round_up(min(desired, _round_up(rows, sublane)), sublane)
    elif tile_rows <= 0 or tile_rows % sublane:
        raise ValueError(f"tile_rows must be a positive multiple of {sublane}")

    # --- N tile --------------------------------------------------------------
    tn_candidates = [c for c in (2048, 1024, 512, 256, 128)
                     if c >= min_tn_hw and c < H and H % c == 0]
    if tile_n is not None:
        if tile_n != H and (tile_n <= 0 or tile_n % 128 or H % tile_n):
            raise ValueError("tile_n must equal H or be a 128-multiple divisor of H")
        n_tiled = tile_n < H
    else:
        while True:
            if _working_set_bytes(tile_rows, H, H, itemsize, False) <= budget:
                tile_n, n_tiled = H, False
                break
            tile_n = next((c for c in tn_candidates
                           if _working_set_bytes(tile_rows, c, H, itemsize, True)
                           <= budget), None)
            if tile_n is not None:
                n_tiled = True
                break
            if tile_rows > sublane:                  # shrink row tile and retry
                tile_rows = max(sublane, _round_up(tile_rows // 2, sublane))
                continue
            # Nothing fits even at minimal tiles: take the narrowest slab.
            # TODO(synk): K-tiled path with f32 VMEM accumulator for huge H.
            tile_n = tn_candidates[-1] if tn_candidates else H
            n_tiled = tile_n < H
            break
        # v7x has 2 TensorCores: for a single-row-tile problem split N in two
        # parallel tiles so both cores DMA/multiply half the columns each.
        if (is_v7 and not n_tiled and rows <= tile_rows and H % 512 == 0
                and (H // 2) % min_tn_hw == 0
                and _working_set_bytes(tile_rows, H // 2, H, itemsize, True) <= budget):
            tile_n, n_tiled = H // 2, True

    n_tiles = H // tile_n

    # --- pad ragged row counts (padded rows dropped after the call) ----------
    rows_p = _round_up(rows, tile_rows)
    num_row_tiles = rows_p // tile_rows
    x2 = x.reshape(rows, H)
    if rows_p != rows:
        x2 = jnp.pad(x2, ((0, rows_p - rows), (0, 0)))
    b2 = b.reshape(1, H)

    # --- grid order: minimize HBM re-streaming in the N-tiled path -----------
    # rows-outer re-reads the full weight once per row tile; rows-inner
    # re-reads x once per N slab.  Pick the cheaper.
    if n_tiled and num_row_tiles > 1:
        rows_outer_reads = H * H * num_row_tiles + rows_p * H
        rows_inner_reads = H * H + rows_p * H * n_tiles
        rows_inner = rows_inner_reads < rows_outer_reads
    else:
        rows_inner = False

    if rows_inner:
        grid = (n_tiles, num_row_tiles)
        x_map = lambda j, i: (i, 0)
        w_map = lambda j, i: (0, j)
        o_map = lambda j, i: (i, j)
        x_passes, w_passes = n_tiles, 1
    else:
        grid = (num_row_tiles, n_tiles)
        x_map = lambda i, j: (i, 0)
        w_map = lambda i, j: (0, j)
        o_map = lambda i, j: (i, j)
        x_passes, w_passes = 1, (num_row_tiles if n_tiled else 1)

    flops = 2 * rows_p * H * H
    bytes_accessed = itemsize * (rows_p * H * x_passes              # matmul LHS reads
                                 + (rows_p * H if n_tiled else 0)   # residual slabs
                                 + H * H * w_passes                 # weight reads
                                 + H * w_passes                     # bias reads
                                 + rows_p * H)                      # output write

    if n_tiled:
        kernel = functools.partial(_residual_kernel_ntiled, precision=precision)
    else:
        kernel = functools.partial(_residual_kernel, precision=precision)

    def build(single_buf):
        # Constant block index -> weight/bias never re-DMA'd; one buffer halves
        # their VMEM footprint (keeps W resident / allows bigger row tiles).
        w_kwargs = (dict(pipeline_mode=pl.Buffered(1))
                    if (single_buf and not n_tiled) else {})
        in_specs = [pl.BlockSpec((tile_rows, H), x_map)]
        if n_tiled:
            in_specs.append(pl.BlockSpec((tile_rows, tile_n), o_map))   # residual slab
        in_specs += [pl.BlockSpec((H, tile_n), w_map, **w_kwargs),
                     pl.BlockSpec((1, tile_n), w_map, **w_kwargs)]
        return pl.pallas_call(
            kernel,
            out_shape=jax.ShapeDtypeStruct((rows_p, H), x.dtype),
            grid_spec=pltpu.PrefetchScalarGridSpec(
                num_scalar_prefetch=0,
                grid=grid,
                in_specs=in_specs,
                out_specs=pl.BlockSpec((tile_rows, tile_n), o_map),
            ),
            compiler_params=pltpu.CompilerParams(
                dimension_semantics=("parallel", "parallel"),
                vmem_limit_bytes=vmem_limit_bytes,
            ),
            cost_estimate=pl.CostEstimate(
                flops=flops, transcendentals=0, bytes_accessed=bytes_accessed),
        )

    args = (x2, x2, w, b2) if n_tiled else (x2, w, b2)
    try:
        out2 = build(single_buffer_weight)(*args)
    except Exception:
        if not (single_buffer_weight and not n_tiled):
            raise
        # Fallback: rebuild with default double-buffering if Buffered(1) fails.
        out2 = build(False)(*args)

    if rows_p != rows:
        out2 = out2[:rows]
    return out2.reshape(B, S, H)


if __name__ == "__main__":
    key = jax.random.PRNGKey(0)

    def make_inputs(B, S, H, dtype):
        kx, kw, kb = jax.random.split(jax.random.fold_in(key, B * 1000 + S + H), 3)
        x = jax.random.normal(kx, (B, S, H), dtype=jnp.float32)
        # Deterministic "Linear" parameters (Kaiming-ish scale, like torch default).
        w = jax.random.uniform(kw, (H, H), dtype=jnp.float32,
                               minval=-1.0, maxval=1.0) / jnp.sqrt(H)
        b = jax.random.uniform(kb, (H,), dtype=jnp.float32,
                               minval=-1.0, maxval=1.0) / jnp.sqrt(H)
        return x.astype(dtype), w.astype(dtype), b.astype(dtype)

    def reference(x, w, b):
        xf, wf, bf = (t.astype(jnp.float32) for t in (x, w, b))
        return xf + (jnp.einsum("bsh,hk->bsk", xf, wf) + bf)

    # 1) Tiny f32 shape -> single block (grid (1,1); (1,2) across v7x's 2 TCs).
    x, w, b = make_inputs(2, 8, 128, jnp.float32)
    out = residual_linear(x, w, b)
    jax.block_until_ready(out)
    assert jnp.allclose(out.astype(jnp.float32), reference(x, w, b),
                        atol=1e-3, rtol=1e-3)

    # 2) Ragged row count (rows=800 -> padded), multi-row-tile path.
    x, w, b = make_inputs(4, 200, 256, jnp.float32)
    out = residual_linear(x, w, b)
    jax.block_until_ready(out)
    assert jnp.allclose(out.astype(jnp.float32), reference(x, w, b),
                        atol=1e-3, rtol=1e-3)

    # 3) bf16 I/O with f32 accumulation inside the kernel.
    x, w, b = make_inputs(2, 8, 128, jnp.bfloat16)
    out = residual_linear(x, w, b)
    jax.block_until_ready(out)
    assert jnp.allclose(out.astype(jnp.float32), reference(x, w, b),
                        atol=3e-2, rtol=3e-2)

    # 4) Forced N-tiled path (weight slabs): rows-inner grid order.
    x, w, b = make_inputs(2, 64, 256, jnp.float32)
    out = residual_linear(x, w, b, tile_rows=64, tile_n=128)
    jax.block_until_ready(out)
    assert jnp.allclose(out.astype(jnp.float32), reference(x, w, b),
                        atol=1e-3, rtol=1e-3)

    # 5) Forced N-tiled path: rows-outer grid order (rows >> H).
    x, w, b = make_inputs(4, 256, 256, jnp.float32)
    out = residual_linear(x, w, b, tile_rows=256, tile_n=128)
    jax.block_until_ready(out)
    assert jnp.allclose(out.astype(jnp.float32), reference(x, w, b),
                        atol=1e-3, rtol=1e-3)

    print("KERNEL_OK")
</pallas_src>

<mosaic_0001>
module attributes {stable_mosaic.version = 11 : i64} {
  func.func @_residual_kernel(%arg0: i32, %arg1: i32, %arg2: memref<16x128xf32, #tpu.memory_space<vmem>>, %arg3: memref<128x128xf32, #tpu.memory_space<vmem>>, %arg4: memref<1x128xf32, #tpu.memory_space<vmem>>, %arg5: memref<16x128xf32, #tpu.memory_space<vmem>>) attributes {dimension_semantics = [#tpu.dimension_semantics<parallel>, #tpu.dimension_semantics<parallel>], iteration_bounds = array<i64: 1, 1>, scalar_prefetch = 0 : i64, scratch_operands = 0 : i64, tpu.core_type = #tpu.core_type<tc>, window_params = [{transform_indices = @transform_0, window_bounds = array<i64: 16, 128>}, {pipeline_mode = #tpu.pipeline_mode<synchronous>, transform_indices = @transform_1, window_bounds = array<i64: 128, 128>}, {pipeline_mode = #tpu.pipeline_mode<synchronous>, transform_indices = @transform_2, window_bounds = array<i64: 1, 128>}, {transform_indices = @transform_3, window_bounds = array<i64: 16, 128>}]} {
    %c0 = arith.constant 0 : index
    %c0_0 = arith.constant 0 : index
    %0 = vector.load %arg2[%c0, %c0_0] : memref<16x128xf32, #tpu.memory_space<vmem>>, vector<16x128xf32>
    %c0_1 = arith.constant 0 : index
    %c0_2 = arith.constant 0 : index
    %1 = vector.load %arg3[%c0_1, %c0_2] : memref<128x128xf32, #tpu.memory_space<vmem>>, vector<128x128xf32>
    %cst = arith.constant dense<0.000000e+00> : vector<16x128xf32>
    %2 = tpu.matmul %0, %1, %cst {dimension_numbers = #tpu.dot_dimension_numbers<[1], [0], [0], [1], [0, 0, 1, 1], [], []>} : vector<16x128xf32>, vector<128x128xf32>, vector<16x128xf32> -> vector<16x128xf32>
    %c0_3 = arith.constant 0 : index
    %c0_4 = arith.constant 0 : index
    %3 = vector.load %arg2[%c0_3, %c0_4] : memref<16x128xf32, #tpu.memory_space<vmem>>, vector<16x128xf32>
    %4 = arith.addf %3, %2 : vector<16x128xf32>
    %c0_5 = arith.constant 0 : index
    %c0_6 = arith.constant 0 : index
    %5 = vector.load %arg4[%c0_5, %c0_6] : memref<1x128xf32, #tpu.memory_space<vmem>>, vector<1x128xf32>
    %6 = vector.broadcast %5 : vector<1x128xf32> to vector<16x128xf32>
    %7 = arith.addf %4, %6 : vector<16x128xf32>
    %c0_7 = arith.constant 0 : index
    %c0_8 = arith.constant 0 : index
    %8 = vector.load %arg5[%c0_7, %c0_8] : memref<16x128xf32, #tpu.memory_space<vmem>>, vector<16x128xf32>
    tpu.vector_store %arg5[%c0_7, %c0_8], %7 {strides = array<i32>} : memref<16x128xf32, #tpu.memory_space<vmem>>, vector<16x128xf32>,
    return
  }
  func.func @transform_0(%arg0: i32, %arg1: i32) -> (i32, i32) {
    %c0_i32 = arith.constant 0 : i32
    %c0_i32_0 = arith.constant 0 : i32
    return %arg0, %c0_i32 : i32, i32
  }
  func.func @transform_1(%arg0: i32, %arg1: i32) -> (i32, i32) {
    %c0_i32 = arith.constant 0 : i32
    %c0_i32_0 = arith.constant 0 : i32
    return %c0_i32, %arg1 : i32, i32
  }
  func.func @transform_2(%arg0: i32, %arg1: i32) -> (i32, i32) {
    %c0_i32 = arith.constant 0 : i32
    %c0_i32_0 = arith.constant 0 : i32
    return %c0_i32, %arg1 : i32, i32
  }
  func.func @transform_3(%arg0: i32, %arg1: i32) -> (i32, i32) {
    %c0_i32 = arith.constant 0 : i32
    return %arg0, %arg1 : i32, i32
  }
}

module attributes {stable_mosaic.version = 11 : i64} {
  func.func @_residual_kernel(%arg0: i32, %arg1: i32, %arg2: memref<16x128xf32, #tpu.memory_space<vmem>>, %arg3: memref<128x128xf32, #tpu.memory_space<vmem>>, %arg4: memref<1x128xf32, #tpu.memory_space<vmem>>, %arg5: memref<16x128xf32, #tpu.memory_space<vmem>>) attributes {dimension_semantics = [#tpu.dimension_semantics<parallel>, #tpu.dimension_semantics<parallel>], iteration_bounds = array<i64: 1, 1>, scalar_prefetch = 0 : i64, scratch_operands = 0 : i64, tpu.core_type = #tpu.core_type<tc>, window_params = [{transform_indices = @transform_0, window_bounds = array<i64: 16, 128>}, {transform_indices = @transform_1, window_bounds = array<i64: 128, 128>}, {transform_indices = @transform_2, window_bounds = array<i64: 1, 128>}, {transform_indices = @transform_3, window_bounds = array<i64: 16, 128>}]} {
    %c0 = arith.constant 0 : index
    %c0_0 = arith.constant 0 : index
    %0 = vector.load %arg2[%c0, %c0_0] : memref<16x128xf32, #tpu.memory_space<vmem>>, vector<16x128xf32>
    %c0_1 = arith.constant 0 : index
    %c0_2 = arith.constant 0 : index
    %1 = vector.load %arg3[%c0_1, %c0_2] : memref<128x128xf32, #tpu.memory_space<vmem>>, vector<128x128xf32>
    %cst = arith.constant dense<0.000000e+00> : vector<16x128xf32>
    %2 = tpu.matmul %0, %1, %cst {dimension_numbers = #tpu.dot_dimension_numbers<[1], [0], [0], [1], [0, 0, 1, 1], [], []>} : vector<16x128xf32>, vector<128x128xf32>, vector<16x128xf32> -> vector<16x128xf32>
    %c0_3 = arith.constant 0 : index
    %c0_4 = arith.constant 0 : index
    %3 = vector.load %arg2[%c0_3, %c0_4] : memref<16x128xf32, #tpu.memory_space<vmem>>, vector<16x128xf32>
    %4 = arith.addf %3, %2 : vector<16x128xf32>
    %c0_5 = arith.constant 0 : index
    %c0_6 = arith.constant 0 : index
    %5 = vector.load %arg4[%c0_5, %c0_6] : memref<1x128xf32, #tpu.memory_space<vmem>>, vector<1x128xf32>
    %6 = vector.broadcast %5 : vector<1x128xf32> to vector<16x128xf32>
    %7 = arith.addf %4, %6 : vector<16x128xf32>
    %c0_7 = arith.constant 0 : index
    %c0_8 = arith.constant 0 : index
    %8 = vector.load %arg5[%c0_7, %c0_8] : memref<16x128xf32, #tpu.memory_space<vmem>>, vector<16x128xf32>
    tpu.vector_store %arg5[%c0_7, %c0_8], %7 {strides = array<i32>} : memref<16x128xf32, #tpu.memory_space<vmem>>, vector<16x128xf32>,
    return
  }
  func.func @transform_0(%arg0: i32, %arg1: i32) -> (i32, i32) {
    %c0_i32 = arith.constant 0 : i32
    %c0_i32_0 = arith.constant 0 : i32
    return %arg0, %c0_i32 : i32, i32
  }
  func.func @transform_1(%arg0: i32, %arg1: i32) -> (i32, i32) {
    %c0_i32 = arith.constant 0 : i32
    %c0_i32_0 = arith.constant 0 : i32
    return %c0_i32, %arg1 : i32, i32
  }
  func.func @transform_2(%arg0: i32, %arg1: i32) -> (i32, i32) {
    %c0_i32 = arith.constant 0 : i32
    %c0_i32_0 = arith.constant 0 : i32
    return %c0_i32, %arg1 : i32, i32
  }
  func.func @transform_3(%arg0: i32, %arg1: i32) -> (i32, i32) {
    %c0_i32 = arith.constant 0 : i32
    return %arg0, %arg1 : i32, i32
  }
}

</mosaic_0001>

<llo_original>
// kernel: tpu_custom_call.1
$region0: #{tpu_custom_call.1}
  #allocation0 [shape = 'u32[]', space=smem, size = 0x4, offset = 0x4, fixed_abs, tag = 'smem constant byte address 0x4 - core index']
  #allocation1 [shape = 'u32[144,128]{1,0:T(1,128)}', space=vmem, size = 0x12000, scoped, tag = 'internal scratch']
  %s0 = inlined_call_operand.hbm [shape: f32[16,128], index: 0, kind: input, shape index: {}]
  %s1 = inlined_call_operand.hbm [shape: f32[128,128], index: 1, kind: input, shape index: {}]
  %s2 = inlined_call_operand.vmem [shape: f32[1,128], index: 2, kind: input, shape index: {}]
  %s3 = inlined_call_operand.hbm [shape: f32[16,128], index: 3, kind: output, shape index: {}]
  %s4 = sld [smem:[#allocation0]]
  $region30: #{tpu_custom_call.1} parent=0
    _
  %s6 = ssub.s32 1, %s4
  %s7 = scalar_select 0, %s6, %s4
  $region1: #{tpu_custom_call.1} parent=0
    #allocation2 [shape = 'u8[8192]{0}', space=vmem, size = 0x2000, scoped, tag = 'input window, operand 0, single buffered']
    #allocation3 [shape = 's32[1]{0}', space=sflag, size = 0x4, scoped, tag = 'scoped memory for tpu_custom_call.1']
    #allocation4 [shape = 's32[1]{0}', space=sflag, size = 0x4, scoped, tag = 'scoped memory for tpu_custom_call.1']
    #allocation5 [shape = 'u8[65536]{0}', space=vmem, size = 0x10000, scoped, tag = 'input window, operand 1, single buffered']
    #allocation6 [shape = 's32[1]{0}', space=sflag, size = 0x4, scoped, tag = 'scoped memory for tpu_custom_call.1']
    #allocation7 [shape = 'u8[8192]{0}', space=vmem, size = 0x2000, scoped, tag = 'output window, operand 0, single buffered']
    %8 = vsyncpa [#allocation3], 0
    %9 = vsyncpa [#allocation6], 0
    %10 = vsyncpa [#allocation4], 0
    // Predicated region
    $region2: #{tpu_custom_call.1} parent=1 // pred_check
      _
    $region3: #{tpu_custom_call.1} parent=1 // pred_check_branch
      %12 = sbr.rel (0) target = $region5
    $region4: #{tpu_custom_call.1} parent=1 // pred_region
      %s14 = ssub.s32 256, 256
      %15 = vsyncadd [#allocation3], %s14
      %s16 = sshll.u32 [#allocation2], 4
      %s17 = int_to_ptr.vmem [resolvable:$true] %s16
      %22 = dma.hbm_to_vmem [thread:$0]  %s0, 256, %s17, [#allocation3], 128, 128, 8
    $region5: #{tpu_custom_call.1} parent=1 // pred_fallthru
      _
    // Predicated region
    $region6: #{tpu_custom_call.1} parent=1 // pred_check
      _
    $region7: #{tpu_custom_call.1} parent=1 // pred_check_branch
      %24 = sbr.rel (0) target = $region9
    $region8: #{tpu_custom_call.1} parent=1 // pred_region
      %s26 = ssub.s32 2048, 2048
      %27 = vsyncadd [#allocation6], %s26
      %s28 = sshll.u32 [#allocation5], 4
      %s29 = int_to_ptr.vmem [resolvable:$true] %s28
      %34 = dma.hbm_to_vmem [thread:$0]  %s1, 2048, %s29, [#allocation6], 128, 128, 8
    $region9: #{tpu_custom_call.1} parent=1 // pred_fallthru
      _
    // Predicated region
    $region10: #{tpu_custom_call.1} parent=1 // pred_check
      _
    $region11: #{tpu_custom_call.1} parent=1 // pred_check_branch
      %36 = sbr.rel (0) target = $region13
    $region12: #{tpu_custom_call.1} parent=1 // pred_region
      _
    $region13: #{tpu_custom_call.1} parent=1 // pred_fallthru
      _
    // Predicated region
    $region14: #{tpu_custom_call.1} parent=1 // pred_check
      _
    $region15: #{tpu_custom_call.1} parent=1 // pred_check_branch
      %38 = sbr.rel (0) target = $region17
    $region16: #{tpu_custom_call.1} parent=1 // pred_region
      %39 = dma.done [#allocation3], 256
    $region17: #{tpu_custom_call.1} parent=1 // pred_fallthru
      _
    // Predicated region
    $region18: #{tpu_custom_call.1} parent=1 // pred_check
      _
    $region19: #{tpu_custom_call.1} parent=1 // pred_check_branch
      %41 = sbr.rel (0) target = $region21
    $region20: #{tpu_custom_call.1} parent=1 // pred_region
      %42 = dma.done [#allocation6], 2048
    $region21: #{tpu_custom_call.1} parent=1 // pred_fallthru
      _
    %v43 = vld [vmem:[#allocation2] sm:$0xff]
    %v44 = vld [vmem:[#allocation2 + $0x8] sm:$0xff]
    %v45 = vld [vmem:[#allocation5] sm:$0xff]
    %v46 = vld [vmem:[#allocation5 + $0x8] sm:$0xff]
    %v47 = vld [vmem:[#allocation5 + $0x10] sm:$0xff]
    %v48 = vld [vmem:[#allocation5 + $0x18] sm:$0xff]
    %v49 = vld [vmem:[#allocation5 + $0x20] sm:$0xff]
    %v50 = vld [vmem:[#allocation5 + $0x28] sm:$0xff]
    %v51 = vld [vmem:[#allocation5 + $0x30] sm:$0xff]
    %v52 = vld [vmem:[#allocation5 + $0x38] sm:$0xff]
    %v53 = vld [vmem:[#allocation5 + $0x40] sm:$0xff]
    %v54 = vld [vmem:[#allocation5 + $0x48] sm:$0xff]
    %v55 = vld [vmem:[#allocation5 + $0x50] sm:$0xff]
    %v56 = vld [vmem:[#allocation5 + $0x58] sm:$0xff]
    %v57 = vld [vmem:[#allocation5 + $0x60] sm:$0xff]
    %v58 = vld [vmem:[#allocation5 + $0x68] sm:$0xff]
    %v59 = vld [vmem:[#allocation5 + $0x70] sm:$0xff]
    %v60 = vld [vmem:[#allocation5 + $0x78] sm:$0xff]
    %61 = vmatprep.subr.mxu0 0.0
    %62 = vmatpush1.msra.mxu0 %v45
    %63 = vmatprep.subr.mxu0 0.0
    %64 = vmatpush1.msra.mxu0 %v46
    %65 = vmatprep.subr.mxu0 0.0
    %66 = vmatpush1.msra.mxu0 %v47
    %67 = vmatprep.subr.mxu0 0.0
    %68 = vmatpush1.msra.mxu0 %v48
    %69 = vmatprep.subr.mxu0 0.0
    %70 = vmatpush1.msra.mxu0 %v49
    %71 = vmatprep.subr.mxu0 0.0
    %72 = vmatpush1.msra.mxu0 %v50
    %73 = vmatprep.subr.mxu0 0.0
    %74 = vmatpush1.msra.mxu0 %v51
    %75 = vmatprep.subr.mxu0 0.0
    %76 = vmatpush1.msra.mxu0 %v52
    %77 = vmatprep.subr.mxu0 0.0
    %78 = vmatpush1.msra.mxu0 %v53
    %79 = vmatprep.subr.mxu0 0.0
    %80 = vmatpush1.msra.mxu0 %v54
    %81 = vmatprep.subr.mxu0 0.0
    %82 = vmatpush1.msra.mxu0 %v55
    %83 = vmatprep.subr.mxu0 0.0
    %84 = vmatpush1.msra.mxu0 %v56
    %85 = vmatprep.subr.mxu0 0.0
    %86 = vmatpush1.msra.mxu0 %v57
    %87 = vmatprep.subr.mxu0 0.0
    %88 = vmatpush1.msra.mxu0 %v58
    %89 = vmatprep.subr.mxu0 0.0
    %90 = vmatpush1.msra.mxu0 %v59
    %91 = vmatprep.subr.mxu0 0.0
    %92 = vmatpush1.msra.mxu0 %v60
    %93 = vmatprep.subr.mxu0 0.0
    %94 = vmatpush1.msra.mxu0 0.0
    %95 = vmatprep.subr.mxu0 0.0
    %96 = vmatpush1.msra.mxu0 0.0
    %97 = vmatprep.subr.mxu0 0.0
    %98 = vmatpush1.msra.mxu0 0.0
    %99 = vmatprep.subr.mxu0 0.0
    %100 = vmatpush1.msra.mxu0 0.0
    %101 = vmatprep.subr.mxu0 0.0
    %102 = vmatpush1.msra.mxu0 0.0
    %103 = vmatprep.subr.mxu0 0.0
    %104 = vmatpush1.msra.mxu0 0.0
    %105 = vmatprep.subr.mxu0 0.0
    %106 = vmatpush1.msra.mxu0 0.0
    %107 = vmatprep.subr.mxu0 0.0
    %108 = vmatpush1.msra.mxu0 0.0
    %109 = vmatprep.subr.mxu0 0.0
    %110 = vmatpush1.msra.mxu0 0.0
    %111 = vmatprep.subr.mxu0 0.0
    %112 = vmatpush1.msra.mxu0 0.0
    %113 = vmatprep.subr.mxu0 0.0
    %114 = vmatpush1.msra.mxu0 0.0
    %115 = vmatprep.subr.mxu0 0.0
    %116 = vmatpush1.msra.mxu0 0.0
    %117 = vmatprep.subr.mxu0 0.0
    %118 = vmatpush1.msra.mxu0 0.0
    %119 = vmatprep.subr.mxu0 0.0
    %120 = vmatpush1.msra.mxu0 0.0
    %121 = vmatprep.subr.mxu0 0.0
    %122 = vmatpush1.msra.mxu0 0.0
    %123 = vmatprep.subr.mxu0 0.0
    %124 = vmatpush1.msra.mxu0 0.0
    %125 = vmatprep.mubr.f32.mxu0 0.0
    %126 = vmatmul.mubr.f32.gmra.mrb[0].mxu0 %v43
    %v127 = vpop.f32.mrb[0].mxu0
    %v128 = vadd.f32 0.0, %v127
    %v129 = vpop.f32.mrb[0].mxu0
    %130 = vmatprep.mubr.f32.mxu0 0.0
    %131 = vmatmul.mubr.f32.gmra.mrb[0].mxu0 %v44
    %v132 = vpop.f32.mrb[0].mxu0
    %v133 = vadd.f32 0.0, %v132
    %v134 = vpop.f32.mrb[0].mxu0
    %135 = vdwg.mxu0
    %v136 = vadd.f32 %v43, %v128
    %v137 = vadd.f32 %v44, %v133
    %v138 = vld [vmem:[%s2] sm:$0x1]
    %v140 = vlaneseq
    %v141 = vshrl.u32 %v140, 7
    %v142 = vsub.s32 0, %v141
    %v143 = vrot.slane %v138, %v142
    %v145 = vadd.f32 %v136, %v143
    %v146 = vadd.f32 %v137, %v143
    %147 = vst [vmem:[#allocation7] sm:$0xff] %v145
    %148 = vst [vmem:[#allocation7 + $0x8] sm:$0xff] %v146
    // Predicated region
    $region22: #{tpu_custom_call.1} parent=1 // pred_check
      _
    $region23: #{tpu_custom_call.1} parent=1 // pred_check_branch
      %150 = sbr.rel (0) target = $region25
    $region24: #{tpu_custom_call.1} parent=1 // pred_region
      %s152 = ssub.s32 256, 256
      %153 = vsyncadd [#allocation4], %s152
      %s154 = sshll.u32 [#allocation7], 4
      %s155 = int_to_ptr.vmem [resolvable:$true] %s154
      %160 = dma.vmem_to_hbm [thread:$0]  %s155, 256, %s3, [#allocation4], 128, 128, 8
    $region25: #{tpu_custom_call.1} parent=1 // pred_fallthru
      _
    // Predicated region
    $region26: #{tpu_custom_call.1} parent=1 // pred_check
      _
    $region27: #{tpu_custom_call.1} parent=1 // pred_check_branch
      %162 = sbr.rel (0) target = $region29
    $region28: #{tpu_custom_call.1} parent=1 // pred_region
      %163 = dma.done [#allocation4], 256
    $region29: #{tpu_custom_call.1} parent=1 // pred_fallthru
      _
    %164 = vsyncpa [#allocation3], 1
    %165 = vsyncpa [#allocation6], 1
    %166 = vsyncpa [#allocation4], 1

// kernel: tpu_custom_call.1
$region0: #{tpu_custom_call.1}
  #allocation0 [shape = 'u32[]', space=smem, size = 0x4, offset = 0x4, fixed_abs, tag = 'smem constant byte address 0x4 - core index']
  #allocation1 [shape = 'u32[144,128]{1,0:T(1,128)}', space=vmem, size = 0x12000, scoped, tag = 'internal scratch']
  %s0 = inlined_call_operand.hbm [shape: f32[16,128], index: 0, kind: input, shape index: {}]
  %s1 = inlined_call_operand.hbm [shape: f32[128,128], index: 1, kind: input, shape index: {}]
  %s2 = inlined_call_operand.vmem [shape: f32[1,128], index: 2, kind: input, shape index: {}]
  %s3 = inlined_call_operand.hbm [shape: f32[16,128], index: 3, kind: output, shape index: {}]
  %s4 = sld [smem:[#allocation0]]
  $region30: #{tpu_custom_call.1} parent=0
    _
  %s6 = ssub.s32 1, %s4
  %s7 = scalar_select 0, %s6, %s4
  $region1: #{tpu_custom_call.1} parent=0
    #allocation2 [shape = 'u8[8192]{0}', space=vmem, size = 0x2000, scoped, tag = 'input window, operand 0, single buffered']
    #allocation3 [shape = 's32[1]{0}', space=sflag, size = 0x4, scoped, tag = 'scoped memory for tpu_custom_call.1']
    #allocation4 [shape = 's32[1]{0}', space=sflag, size = 0x4, scoped, tag = 'scoped memory for tpu_custom_call.1']
    #allocation5 [shape = 'u8[65536]{0}', space=vmem, size = 0x10000, scoped, tag = 'input window, operand 1, single buffered']
    #allocation6 [shape = 's32[1]{0}', space=sflag, size = 0x4, scoped, tag = 'scoped memory for tpu_custom_call.1']
    #allocation7 [shape = 'u8[8192]{0}', space=vmem, size = 0x2000, scoped, tag = 'output window, operand 0, single buffered']
    %8 = vsyncpa [#allocation3], 0
    %9 = vsyncpa [#allocation6], 0
    %10 = vsyncpa [#allocation4], 0
    // Predicated region
    $region2: #{tpu_custom_call.1} parent=1 // pred_check
      _
    $region3: #{tpu_custom_call.1} parent=1 // pred_check_branch
      %12 = sbr.rel (0) target = $region5
    $region4: #{tpu_custom_call.1} parent=1 // pred_region
      %s14 = ssub.s32 256, 256
      %15 = vsyncadd [#allocation3], %s14
      %s16 = sshll.u32 [#allocation2], 4
      %s17 = int_to_ptr.vmem [resolvable:$true] %s16
      %22 = dma.hbm_to_vmem [thread:$0]  %s0, 256, %s17, [#allocation3], 128, 128, 8
    $region5: #{tpu_custom_call.1} parent=1 // pred_fallthru
      _
    // Predicated region
    $region6: #{tpu_custom_call.1} parent=1 // pred_check
      _
    $region7: #{tpu_custom_call.1} parent=1 // pred_check_branch
      %24 = sbr.rel (0) target = $region9
    $region8: #{tpu_custom_call.1} parent=1 // pred_region
      %s26 = ssub.s32 2048, 2048
      %27 = vsyncadd [#allocation6], %s26
      %s28 = sshll.u32 [#allocation5], 4
      %s29 = int_to_ptr.vmem [resolvable:$true] %s28
      %34 = dma.hbm_to_vmem [thread:$0]  %s1, 2048, %s29, [#allocation6], 128, 128, 8
    $region9: #{tpu_custom_call.1} parent=1 // pred_fallthru
      _
    // Predicated region
    $region10: #{tpu_custom_call.1} parent=1 // pred_check
      _
    $region11: #{tpu_custom_call.1} parent=1 // pred_check_branch
      %36 = sbr.rel (0) target = $region13
    $region12: #{tpu_custom_call.1} parent=1 // pred_region
      _
    $region13: #{tpu_custom_call.1} parent=1 // pred_fallthru
      _
    // Predicated region
    $region14: #{tpu_custom_call.1} parent=1 // pred_check
      _
    $region15: #{tpu_custom_call.1} parent=1 // pred_check_branch
      %38 = sbr.rel (0) target = $region17
    $region16: #{tpu_custom_call.1} parent=1 // pred_region
      %39 = dma.done [#allocation3], 256
    $region17: #{tpu_custom_call.1} parent=1 // pred_fallthru
      _
    // Predicated region
    $region18: #{tpu_custom_call.1} parent=1 // pred_check
      _
    $region19: #{tpu_custom_call.1} parent=1 // pred_check_branch
      %41 = sbr.rel (0) target = $region21
    $region20: #{tpu_custom_call.1} parent=1 // pred_region
      %42 = dma.done [#allocation6], 2048
    $region21: #{tpu_custom_call.1} parent=1 // pred_fallthru
      _
    %v43 = vld [vmem:[#allocation2] sm:$0xff]
    %v44 = vld [vmem:[#allocation2 + $0x8] sm:$0xff]
    %v45 = vld [vmem:[#allocation5] sm:$0xff]
    %v46 = vld [vmem:[#allocation5 + $0x8] sm:$0xff]
    %v47 = vld [vmem:[#allocation5 + $0x10] sm:$0xff]
    %v48 = vld [vmem:[#allocation5 + $0x18] sm:$0xff]
    %v49 = vld [vmem:[#allocation5 + $0x20] sm:$0xff]
    %v50 = vld [vmem:[#allocation5 + $0x28] sm:$0xff]
    %v51 = vld [vmem:[#allocation5 + $0x30] sm:$0xff]
    %v52 = vld [vmem:[#allocation5 + $0x38] sm:$0xff]
    %v53 = vld [vmem:[#allocation5 + $0x40] sm:$0xff]
    %v54 = vld [vmem:[#allocation5 + $0x48] sm:$0xff]
    %v55 = vld [vmem:[#allocation5 + $0x50] sm:$0xff]
    %v56 = vld [vmem:[#allocation5 + $0x58] sm:$0xff]
    %v57 = vld [vmem:[#allocation5 + $0x60] sm:$0xff]
    %v58 = vld [vmem:[#allocation5 + $0x68] sm:$0xff]
    %v59 = vld [vmem:[#allocation5 + $0x70] sm:$0xff]
    %v60 = vld [vmem:[#allocation5 + $0x78] sm:$0xff]
    %61 = vmatprep.subr.mxu0 0.0
    %62 = vmatpush1.msra.mxu0 %v45
    %63 = vmatprep.subr.mxu0 0.0
    %64 = vmatpush1.msra.mxu0 %v46
    %65 = vmatprep.subr.mxu0 0.0
    %66 = vmatpush1.msra.mxu0 %v47
    %67 = vmatprep.subr.mxu0 0.0
    %68 = vmatpush1.msra.mxu0 %v48
    %69 = vmatprep.subr.mxu0 0.0
    %70 = vmatpush1.msra.mxu0 %v49
    %71 = vmatprep.subr.mxu0 0.0
    %72 = vmatpush1.msra.mxu0 %v50
    %73 = vmatprep.subr.mxu0 0.0
    %74 = vmatpush1.msra.mxu0 %v51
    %75 = vmatprep.subr.mxu0 0.0
    %76 = vmatpush1.msra.mxu0 %v52
    %77 = vmatprep.subr.mxu0 0.0
    %78 = vmatpush1.msra.mxu0 %v53
    %79 = vmatprep.subr.mxu0 0.0
    %80 = vmatpush1.msra.mxu0 %v54
    %81 = vmatprep.subr.mxu0 0.0
    %82 = vmatpush1.msra.mxu0 %v55
    %83 = vmatprep.subr.mxu0 0.0
    %84 = vmatpush1.msra.mxu0 %v56
    %85 = vmatprep.subr.mxu0 0.0
    %86 = vmatpush1.msra.mxu0 %v57
    %87 = vmatprep.subr.mxu0 0.0
    %88 = vmatpush1.msra.mxu0 %v58
    %89 = vmatprep.subr.mxu0 0.0
    %90 = vmatpush1.msra.mxu0 %v59
    %91 = vmatprep.subr.mxu0 0.0
    %92 = vmatpush1.msra.mxu0 %v60
    %93 = vmatprep.subr.mxu0 0.0
    %94 = vmatpush1.msra.mxu0 0.0
    %95 = vmatprep.subr.mxu0 0.0
    %96 = vmatpush1.msra.mxu0 0.0
    %97 = vmatprep.subr.mxu0 0.0
    %98 = vmatpush1.msra.mxu0 0.0
    %99 = vmatprep.subr.mxu0 0.0
    %100 = vmatpush1.msra.mxu0 0.0
    %101 = vmatprep.subr.mxu0 0.0
    %102 = vmatpush1.msra.mxu0 0.0
    %103 = vmatprep.subr.mxu0 0.0
    %104 = vmatpush1.msra.mxu0 0.0
    %105 = vmatprep.subr.mxu0 0.0
    %106 = vmatpush1.msra.mxu0 0.0
    %107 = vmatprep.subr.mxu0 0.0
    %108 = vmatpush1.msra.mxu0 0.0
    %109 = vmatprep.subr.mxu0 0.0
    %110 = vmatpush1.msra.mxu0 0.0
    %111 = vmatprep.subr.mxu0 0.0
    %112 = vmatpush1.msra.mxu0 0.0
    %113 = vmatprep.subr.mxu0 0.0
    %114 = vmatpush1.msra.mxu0 0.0
    %115 = vmatprep.subr.mxu0 0.0
    %116 = vmatpush1.msra.mxu0 0.0
    %117 = vmatprep.subr.mxu0 0.0
    %118 = vmatpush1.msra.mxu0 0.0
    %119 = vmatprep.subr.mxu0 0.0
    %120 = vmatpush1.msra.mxu0 0.0
    %121 = vmatprep.subr.mxu0 0.0
    %122 = vmatpush1.msra.mxu0 0.0
    %123 = vmatprep.subr.mxu0 0.0
    %124 = vmatpush1.msra.mxu0 0.0
    %125 = vmatprep.mubr.f32.mxu0 0.0
    %126 = vmatmul.mubr.f32.gmra.mrb[0].mxu0 %v43
    %v127 = vpop.f32.mrb[0].mxu0
    %v128 = vadd.f32 0.0, %v127
    %v129 = vpop.f32.mrb[0].mxu0
    %130 = vmatprep.mubr.f32.mxu0 0.0
    %131 = vmatmul.mubr.f32.gmra.mrb[0].mxu0 %v44
    %v132 = vpop.f32.mrb[0].mxu0
    %v133 = vadd.f32 0.0, %v132
    %v134 = vpop.f32.mrb[0].mxu0
    %135 = vdwg.mxu0
    %v136 = vadd.f32 %v43, %v128
    %v137 = vadd.f32 %v44, %v133
    %v138 = vld [vmem:[%s2] sm:$0x1]
    %v140 = vlaneseq
    %v141 = vshrl.u32 %v140, 7
    %v142 = vsub.s32 0, %v141
    %v143 = vrot.slane %v138, %v142
    %v145 = vadd.f32 %v136, %v143
    %v146 = vadd.f32 %v137, %v143
    %147 = vst [vmem:[#allocation7] sm:$0xff] %v145
    %148 = vst [vmem:[#allocation7 + $0x8] sm:$0xff] %v146
    // Predicated region
    $region22: #{tpu_custom_call.1} parent=1 // pred_check
      _
    $region23: #{tpu_custom_call.1} parent=1 // pred_check_branch
      %150 = sbr.rel (0) target = $region25
    $region24: #{tpu_custom_call.1} parent=1 // pred_region
      %s152 = ssub.s32 256, 256
      %153 = vsyncadd [#allocation4], %s152
      %s154 = sshll.u32 [#allocation7], 4
      %s155 = int_to_ptr.vmem [resolvable:$true] %s154
      %160 = dma.vmem_to_hbm [thread:$0]  %s155, 256, %s3, [#allocation4], 128, 128, 8
    $region25: #{tpu_custom_call.1} parent=1 // pred_fallthru
      _
    // Predicated region
    $region26: #{tpu_custom_call.1} parent=1 // pred_check
      _
    $region27: #{tpu_custom_call.1} parent=1 // pred_check_branch
      %162 = sbr.rel (0) target = $region29
    $region28: #{tpu_custom_call.1} parent=1 // pred_region
      %163 = dma.done [#allocation4], 256
    $region29: #{tpu_custom_call.1} parent=1 // pred_fallthru
      _
    %164 = vsyncpa [#allocation3], 1
    %165 = vsyncpa [#allocation6], 1
    %166 = vsyncpa [#allocation4], 1

</llo_original>
